<compile_context>
chip_gen: v5e
topology: v5e:2x2
jax: 0.10.0
libtpu: 0.0.40
codegen_flags: <defaults>
</compile_context>

<pallas_src>
import functools

import jax
import jax.numpy as jnp
from jax.experimental import pallas as pl
from jax.experimental.pallas import tpu as pltpu


def _pad8(n):
    return (n + 7) // 8 * 8


# ----------------------------------------------------------------------------
# Fused Pallas kernel: one token tile per grid step ("parallel"), all K
# FlowSteps applied in-kernel with resident weights.
# ----------------------------------------------------------------------------
def _flownet_kernel(C, C1, C2, N, H, K, boff,
                    z_ref, cond_ref, a_ref, w1_ref, w2_ref, w3_ref, b_ref,
                    zout_ref, dlog_ref, zc_scr):
    oA, o1, o2, o3 = boff

    # Carried activation state for this token tile lives in vregs across the
    # (fully unrolled) K loop; outputs are stored once, full lane width.
    z = z_ref[...]                                      # (C, tok)
    dlog = jnp.zeros_like(dlog_ref)                     # (C2, tok)

    # Stacked coupling-net input [z1; cond]: cond rows written once per tile.
    zc_scr[C1:, :] = cond_ref[...]

    for k in range(K):                                  # K small & static
        b = b_ref[k]                                    # (Rb, 1) bias slab
        # --- ActNorm2d + InvertibleConv1x1 (folded):  y = A @ z + bA ---
        y = (jnp.dot(a_ref[k], z, preferred_element_type=jnp.float32)
             + b[oA:oA + C, :])
        z1 = y[:C1, :]                                  # (C1, tok)
        z2 = y[C1:, :]                                  # (C2, tok)

        # --- FF coupling net on [z1; cond] (single merged first matmul) ---
        zc_scr[:C1, :] = z1
        h = (jnp.dot(w1_ref[k], zc_scr[...], preferred_element_type=jnp.float32)
             + b[o1:o1 + H, :])
        h = jnp.maximum(h, 0.0)
        h = (jnp.dot(w2_ref[k], h, preferred_element_type=jnp.float32)
             + b[o2:o2 + H, :])
        h = jnp.maximum(h, 0.0)
        h = (jnp.dot(w3_ref[k], h, preferred_element_type=jnp.float32)
             + b[o3:o3 + 2 * C2, :])
        # W3 rows pre-permuted so [:C2] = shift, [C2:] = scale ('cross').
        shift = h[:C2, :]
        scale = jax.nn.sigmoid(h[C2:, :] + 2.0) + 1e-6

        # --- affine coupling + data-dependent logdet term ---
        z = jnp.concatenate([z1, (z2 + shift) * scale], axis=0)
        dlog = dlog + jnp.log(scale)

    zout_ref[...] = z
    dlog_ref[...] = dlog


# ----------------------------------------------------------------------------
# FlowNet forward (all K FlowSteps in one pallas_call); PyTorch (B, C, T) in.
# ----------------------------------------------------------------------------
def flownet_forward(z_bct, cond_bct, fused, ld_const, logdet0=0.0):
    B, C, T = z_bct.shape
    N = cond_bct.shape[1]
    K, H, _ = fused["w2"].shape
    C1 = C // 2
    C2 = C - C1
    BT = B * T

    # (channels, tokens) layout: lanes = B*T (lane-dense everywhere).
    z2d = jnp.transpose(z_bct, (1, 0, 2)).reshape(C, BT)
    c2d = jnp.transpose(cond_bct, (1, 0, 2)).reshape(N, BT)

    # Token tile: multiple of 128 lanes when possible, otherwise one block.
    tok = BT
    for cand in (1024, 512, 256, 128):
        if BT >= cand and BT % cand == 0:
            tok = cand
            break
    grid = (BT // tok,)

    def act_spec(rows):                  # blocked along the token (lane) axis
        return pl.BlockSpec((rows, tok), lambda r: (0, r))

    def w_spec(shape):                   # whole stacked weight, resident
        return pl.BlockSpec(shape, lambda r: (0, 0, 0))

    boff = fused["boff"]
    Rb = fused["bias"].shape[1]

    z_out, dlog_acc = pl.pallas_call(
        functools.partial(_flownet_kernel, C, C1, C2, N, H, K, boff),
        out_shape=(jax.ShapeDtypeStruct((C, BT), jnp.float32),
                   jax.ShapeDtypeStruct((C2, BT), jnp.float32)),
        grid=grid,
        in_specs=[
            act_spec(C),                       # z  (tile r)
            act_spec(N),                       # cond (tile r)
            w_spec((K, C, C)),                 # folded actnorm + invconv
            w_spec((K, H, C1 + N)),            # coupling W1 (merged z1|cond)
            w_spec((K, H, H)),                 # W2
            w_spec((K, 2 * C2, H)),            # W3 ('cross' row-permuted)
            w_spec((K, Rb, 1)),                # packed bias slab
        ],
        out_specs=(act_spec(C),                # transformed z
                   act_spec(C2)),              # accumulated log(scale)
        scratch_shapes=[pltpu.VMEM((C1 + N, tok), jnp.float32)],
        input_output_aliases={0: 0},           # z input buffer reused for zout
        compiler_params=pltpu.CompilerParams(
            dimension_semantics=("parallel",)),
    )(z2d, c2d, fused["A"], fused["w1"], fused["w2"], fused["w3"],
      fused["bias"])

    z_out_bct = jnp.transpose(z_out.reshape(C, B, T), (1, 0, 2))
    dlog_b = jnp.sum(dlog_acc.reshape(C2, B, T), axis=(0, 2))   # per batch
    logdet = logdet0 + ld_const + dlog_b
    return z_out_bct, logdet


# ----------------------------------------------------------------------------
# Deterministic synthetic parameter construction (shapes from __init__),
# kept in native PyTorch (out, in) form.
# ----------------------------------------------------------------------------
def init_flow_step_params(key, C, H, N):
    C1 = C // 2
    C2 = C - C1
    ks = jax.random.split(key, 8)

    an_bias = 0.1 * jax.random.normal(ks[0], (C,), jnp.float32)
    an_logs = 0.1 * jax.random.normal(ks[1], (C,), jnp.float32)

    # InvertibleConv1x1: random orthogonal init (as in glow).
    W, _ = jnp.linalg.qr(jax.random.normal(ks[2], (C, C), jnp.float32))
    w_logdet = jnp.linalg.slogdet(W)[1].astype(jnp.float32)

    lim1 = float((C1 + N) ** -0.5)
    W1 = jax.random.uniform(ks[3], (H, C1 + N), jnp.float32, -lim1, lim1)
    b1 = jax.random.uniform(ks[4], (H,), jnp.float32, -lim1, lim1)
    lim2 = float(H ** -0.5)
    W2 = jax.random.uniform(ks[5], (H, H), jnp.float32, -lim2, lim2)
    b2 = jax.random.uniform(ks[6], (H,), jnp.float32, -lim2, lim2)
    # LinearZeroInit is zero in the module; small random values are used so the
    # affine coupling path is actually exercised (forward semantics unchanged).
    W3 = 0.01 * jax.random.normal(ks[7], (2 * C2, H), jnp.float32)
    b3 = jnp.zeros((2 * C2,), jnp.float32)

    return dict(an_bias=an_bias, an_logs=an_logs, W=W, w_logdet=w_logdet,
                W1=W1, b1=b1, W2=W2, b2=b2, W3=W3, b3=b3)


def fuse_and_stack(params_list, T):
    """Fold actnorm into the 1x1 conv, fold 'cross' split_feature into a row
    permutation of W3, pack the biases into one 8-row-aligned slab, stack all
    layers over K and precompute the data-independent logdet constant."""
    p0 = params_list[0]
    C = p0["W"].shape[0]
    H = p0["W2"].shape[0]
    C1 = C // 2
    C2 = C - C1

    oA = 0
    o1 = oA + _pad8(C)
    o2 = o1 + _pad8(H)
    o3 = o2 + _pad8(H)
    Rb = o3 + _pad8(2 * C2)
    boff = (oA, o1, o2, o3)

    perm = jnp.concatenate([jnp.arange(0, 2 * C2, 2), jnp.arange(1, 2 * C2, 2)])

    A_l, w1_l, w2_l, w3_l, b_l = [], [], [], [], []
    ld_c = jnp.float32(0.0)
    for p in params_list:
        s = jnp.exp(p["an_logs"])                        # (C,)
        A_l.append(p["W"] * s[None, :])                  # W @ diag(exp(logs))
        bA = p["W"] @ (p["an_bias"] * s)                 # (C,)
        w1_l.append(p["W1"])
        w2_l.append(p["W2"])
        w3_l.append(p["W3"][perm, :])                    # 'cross' fold
        b3p = p["b3"][perm]

        slab = jnp.zeros((Rb,), jnp.float32)
        slab = slab.at[oA:oA + C].set(bA)
        slab = slab.at[o1:o1 + H].set(p["b1"])
        slab = slab.at[o2:o2 + H].set(p["b2"])
        slab = slab.at[o3:o3 + 2 * C2].set(b3p)
        b_l.append(slab.reshape(Rb, 1))

        ld_c = ld_c + T * (jnp.sum(p["an_logs"]) + p["w_logdet"])

    fused = dict(A=jnp.stack(A_l), w1=jnp.stack(w1_l), w2=jnp.stack(w2_l),
                 w3=jnp.stack(w3_l), bias=jnp.stack(b_l), boff=boff)
    return fused, ld_c


# ----------------------------------------------------------------------------
# Pure-JAX reference: fully UN-fused / UN-permuted FlowStep (validates the
# actnorm-into-invconv fold and the 'cross' row-permutation fold).
# ----------------------------------------------------------------------------
def flow_step_ref(z, cond, logdet, p):
    B, T, C = z.shape
    C1 = C // 2
    y = (z + p["an_bias"]) * jnp.exp(p["an_logs"])               # ActNorm2d
    y = jnp.einsum("bti,oi->bto", y, p["W"])                     # 1x1 invconv
    z1, z2 = y[..., :C1], y[..., C1:]                            # 'split'
    h = jnp.einsum("bti,oi->bto",
                   jnp.concatenate([z1, cond], axis=-1), p["W1"]) + p["b1"]
    h = jax.nn.relu(h)
    h = jnp.einsum("bti,oi->bto", h, p["W2"]) + p["b2"]
    h = jax.nn.relu(h)
    h = jnp.einsum("bti,oi->bto", h, p["W3"]) + p["b3"]
    shift, scale = h[..., 0::2], h[..., 1::2]                    # 'cross'
    scale = jax.nn.sigmoid(scale + 2.0) + 1e-6
    z2 = (z2 + shift) * scale
    zout = jnp.concatenate([z1, z2], axis=-1)
    dlog = jnp.sum(jnp.log(scale), axis=(1, 2))
    ld = logdet + T * jnp.sum(p["an_logs"]) + T * p["w_logdet"] + dlog
    return zout, ld


if __name__ == "__main__":
    # batch, x_channels, cond_channels, timesteps, hidden_channels, K
    # (T=64 so B*T = 128 fills the 128-lane dimension exactly.)
    B, C, N, T, H, K = 2, 4, 4, 64, 32, 3

    key = jax.random.PRNGKey(0)
    kz, kc, kp = jax.random.split(key, 3)
    z = jax.random.normal(kz, (B, C, T), jnp.float32)        # PyTorch (B, C, T)
    cond = jax.random.normal(kc, (B, N, T), jnp.float32)

    raw = [init_flow_step_params(k, C, H, N) for k in jax.random.split(kp, K)]
    fused, ld_const = fuse_and_stack(raw, T)

    z_out, logdet = flownet_forward(z, cond, fused, ld_const)
    z_out = jax.block_until_ready(z_out)
    logdet = jax.block_until_ready(logdet)

    # Reference check (un-fused per-layer FlowSteps with the real even/odd
    # 'cross' split and explicit actnorm -> invconv chain).
    zr = jnp.transpose(z, (0, 2, 1))
    cr = jnp.transpose(cond, (0, 2, 1))
    ld_ref = jnp.zeros((B,), jnp.float32)
    for p in raw:
        zr, ld_ref = flow_step_ref(zr, cr, ld_ref, p)
    zr = jnp.transpose(zr, (0, 2, 1))

    assert z_out.shape == (B, C, T) and logdet.shape == (B,)
    assert jnp.allclose(z_out, zr, atol=2e-3, rtol=2e-3)
    assert jnp.allclose(logdet, ld_ref, atol=2e-3, rtol=2e-3)
    print("KERNEL_OK")
</pallas_src>

<mosaic_0001>
module attributes {stable_mosaic.version = 11 : i64} {
  func.func @_flownet_kernel(%arg0: i32, %arg1: memref<4x128xf32, #tpu.memory_space<vmem>>, %arg2: memref<4x128xf32, #tpu.memory_space<vmem>>, %arg3: memref<3x4x4xf32, #tpu.memory_space<vmem>>, %arg4: memref<3x32x6xf32, #tpu.memory_space<vmem>>, %arg5: memref<3x32x32xf32, #tpu.memory_space<vmem>>, %arg6: memref<3x4x32xf32, #tpu.memory_space<vmem>>, %arg7: memref<3x80x1xf32, #tpu.memory_space<vmem>>, %arg8: memref<4x128xf32, #tpu.memory_space<vmem>>, %arg9: memref<2x128xf32, #tpu.memory_space<vmem>>, %arg10: memref<6x128xf32, #tpu.memory_space<vmem>>) attributes {dimension_semantics = [#tpu.dimension_semantics<parallel>], iteration_bounds = array<i64: 1>, scalar_prefetch = 0 : i64, scratch_operands = 1 : i64, tpu.core_type = #tpu.core_type<tc>, window_params = [{transform_indices = @transform_0, window_bounds = array<i64: 4, 128>}, {transform_indices = @transform_1, window_bounds = array<i64: 4, 128>}, {pipeline_mode = #tpu.pipeline_mode<synchronous>, transform_indices = @transform_2, window_bounds = array<i64: 3, 4, 4>}, {pipeline_mode = #tpu.pipeline_mode<synchronous>, transform_indices = @transform_3, window_bounds = array<i64: 3, 32, 6>}, {pipeline_mode = #tpu.pipeline_mode<synchronous>, transform_indices = @transform_4, window_bounds = array<i64: 3, 32, 32>}, {pipeline_mode = #tpu.pipeline_mode<synchronous>, transform_indices = @transform_5, window_bounds = array<i64: 3, 4, 32>}, {pipeline_mode = #tpu.pipeline_mode<synchronous>, transform_indices = @transform_6, window_bounds = array<i64: 3, 80, 1>}, {transform_indices = @transform_7, window_bounds = array<i64: 4, 128>}, {transform_indices = @transform_8, window_bounds = array<i64: 2, 128>}]} {
    %c0 = arith.constant 0 : index
    %c0_0 = arith.constant 0 : index
    %0 = vector.load %arg1[%c0, %c0_0] : memref<4x128xf32, #tpu.memory_space<vmem>>, vector<4x128xf32>
    %cst = arith.constant 0.000000e+00 : f32
    %1 = vector.broadcast %cst : f32 to vector<2x128xf32>
    %c0_1 = arith.constant 0 : index
    %c0_2 = arith.constant 0 : index
    %2 = vector.load %arg2[%c0_1, %c0_2] : memref<4x128xf32, #tpu.memory_space<vmem>>, vector<4x128xf32>
    %c2 = arith.constant 2 : index
    %c0_3 = arith.constant 0 : index
    %3 = vector.load %arg10[%c2, %c0_3] : memref<6x128xf32, #tpu.memory_space<vmem>>, vector<4x128xf32>
    tpu.vector_store %arg10[%c2, %c0_3], %2 {strides = array<i32>} : memref<6x128xf32, #tpu.memory_space<vmem>>, vector<4x128xf32>,
    %c0_4 = arith.constant 0 : index
    %c0_5 = arith.constant 0 : index
    %c0_6 = arith.constant 0 : index
    %4 = vector.load %arg7[%c0_4, %c0_5, %c0_6] : memref<3x80x1xf32, #tpu.memory_space<vmem>>, vector<1x80x1xf32>
    %5 = vector.shape_cast %4 : vector<1x80x1xf32> to vector<80x1xf32>
    %c0_7 = arith.constant 0 : index
    %c0_8 = arith.constant 0 : index
    %c0_9 = arith.constant 0 : index
    %6 = vector.load %arg3[%c0_7, %c0_8, %c0_9] : memref<3x4x4xf32, #tpu.memory_space<vmem>>, vector<1x4x4xf32>
    %7 = vector.shape_cast %6 : vector<1x4x4xf32> to vector<4x4xf32>
    %cst_10 = arith.constant dense<0.000000e+00> : vector<4x128xf32>
    %8 = tpu.matmul %7, %0, %cst_10 {dimension_numbers = #tpu.dot_dimension_numbers<[1], [0], [0], [1], [0, 0, 1, 1], [], []>} : vector<4x4xf32>, vector<4x128xf32>, vector<4x128xf32> -> vector<4x128xf32>
    %9 = vector.extract_strided_slice %5 {offsets = [0, 0], sizes = [4, 1], strides = [1, 1]} : vector<80x1xf32> to vector<4x1xf32>
    %10 = vector.broadcast %9 : vector<4x1xf32> to vector<4x128xf32>
    %11 = arith.addf %8, %10 : vector<4x128xf32>
    %12 = vector.extract_strided_slice %11 {offsets = [0, 0], sizes = [2, 128], strides = [1, 1]} : vector<4x128xf32> to vector<2x128xf32>
    %13 = vector.extract_strided_slice %11 {offsets = [2, 0], sizes = [2, 128], strides = [1, 1]} : vector<4x128xf32> to vector<2x128xf32>
    %c0_11 = arith.constant 0 : index
    %c0_12 = arith.constant 0 : index
    %14 = vector.load %arg10[%c0_11, %c0_12] : memref<6x128xf32, #tpu.memory_space<vmem>>, vector<2x128xf32>
    tpu.vector_store %arg10[%c0_11, %c0_12], %12 {strides = array<i32>} : memref<6x128xf32, #tpu.memory_space<vmem>>, vector<2x128xf32>,
    %c0_13 = arith.constant 0 : index
    %c0_14 = arith.constant 0 : index
    %c0_15 = arith.constant 0 : index
    %15 = vector.load %arg4[%c0_13, %c0_14, %c0_15] : memref<3x32x6xf32, #tpu.memory_space<vmem>>, vector<1x32x6xf32>
    %16 = vector.shape_cast %15 : vector<1x32x6xf32> to vector<32x6xf32>
    %c0_16 = arith.constant 0 : index
    %c0_17 = arith.constant 0 : index
    %17 = vector.load %arg10[%c0_16, %c0_17] : memref<6x128xf32, #tpu.memory_space<vmem>>, vector<6x128xf32>
    %cst_18 = arith.constant dense<0.000000e+00> : vector<32x128xf32>
    %18 = tpu.matmul %16, %17, %cst_18 {dimension_numbers = #tpu.dot_dimension_numbers<[1], [0], [0], [1], [0, 0, 1, 1], [], []>} : vector<32x6xf32>, vector<6x128xf32>, vector<32x128xf32> -> vector<32x128xf32>
    %19 = vector.extract_strided_slice %5 {offsets = [8, 0], sizes = [32, 1], strides = [1, 1]} : vector<80x1xf32> to vector<32x1xf32>
    %20 = vector.broadcast %19 : vector<32x1xf32> to vector<32x128xf32>
    %21 = arith.addf %18, %20 : vector<32x128xf32>
    %cst_19 = arith.constant 0.000000e+00 : f32
    %22 = vector.broadcast %cst_19 : f32 to vector<32x128xf32>
    %23 = arith.maximumf %21, %22 : vector<32x128xf32>
    %c0_20 = arith.constant 0 : index
    %c0_21 = arith.constant 0 : index
    %c0_22 = arith.constant 0 : index
    %24 = vector.load %arg5[%c0_20, %c0_21, %c0_22] : memref<3x32x32xf32, #tpu.memory_space<vmem>>, vector<1x32x32xf32>
    %25 = vector.shape_cast %24 : vector<1x32x32xf32> to vector<32x32xf32>
    %cst_23 = arith.constant dense<0.000000e+00> : vector<32x128xf32>
    %26 = tpu.matmul %25, %23, %cst_23 {dimension_numbers = #tpu.dot_dimension_numbers<[1], [0], [0], [1], [0, 0, 1, 1], [], []>} : vector<32x32xf32>, vector<32x128xf32>, vector<32x128xf32> -> vector<32x128xf32>
    %27 = vector.extract_strided_slice %5 {offsets = [40, 0], sizes = [32, 1], strides = [1, 1]} : vector<80x1xf32> to vector<32x1xf32>
    %28 = vector.broadcast %27 : vector<32x1xf32> to vector<32x128xf32>
    %29 = arith.addf %26, %28 : vector<32x128xf32>
    %cst_24 = arith.constant 0.000000e+00 : f32
    %30 = vector.broadcast %cst_24 : f32 to vector<32x128xf32>
    %31 = arith.maximumf %29, %30 : vector<32x128xf32>
    %c0_25 = arith.constant 0 : index
    %c0_26 = arith.constant 0 : index
    %c0_27 = arith.constant 0 : index
    %32 = vector.load %arg6[%c0_25, %c0_26, %c0_27] : memref<3x4x32xf32, #tpu.memory_space<vmem>>, vector<1x4x32xf32>
    %33 = vector.shape_cast %32 : vector<1x4x32xf32> to vector<4x32xf32>
    %cst_28 = arith.constant dense<0.000000e+00> : vector<4x128xf32>
    %34 = tpu.matmul %33, %31, %cst_28 {dimension_numbers = #tpu.dot_dimension_numbers<[1], [0], [0], [1], [0, 0, 1, 1], [], []>} : vector<4x32xf32>, vector<32x128xf32>, vector<4x128xf32> -> vector<4x128xf32>
    %35 = vector.extract_strided_slice %5 {offsets = [72, 0], sizes = [4, 1], strides = [1, 1]} : vector<80x1xf32> to vector<4x1xf32>
    %36 = vector.broadcast %35 : vector<4x1xf32> to vector<4x128xf32>
    %37 = arith.addf %34, %36 : vector<4x128xf32>
    %38 = vector.extract_strided_slice %37 {offsets = [0, 0], sizes = [2, 128], strides = [1, 1]} : vector<4x128xf32> to vector<2x128xf32>
    %39 = vector.extract_strided_slice %37 {offsets = [2, 0], sizes = [2, 128], strides = [1, 1]} : vector<4x128xf32> to vector<2x128xf32>
    %cst_29 = arith.constant 2.000000e+00 : f32
    %40 = vector.broadcast %cst_29 : f32 to vector<2x128xf32>
    %41 = arith.addf %39, %40 : vector<2x128xf32>
    %42 = arith.negf %41 : vector<2x128xf32>
    %43 = math.exp %42 : vector<2x128xf32>
    %cst_30 = arith.constant 1.000000e+00 : f32
    %44 = vector.broadcast %cst_30 : f32 to vector<2x128xf32>
    %45 = arith.addf %44, %43 : vector<2x128xf32>
    %46 = arith.divf %44, %45 : vector<2x128xf32>
    %cst_31 = arith.constant 9.99999997E-7 : f32
    %47 = vector.broadcast %cst_31 : f32 to vector<2x128xf32>
    %48 = arith.addf %46, %47 : vector<2x128xf32>
    %49 = arith.addf %13, %38 : vector<2x128xf32>
    %50 = arith.mulf %49, %48 : vector<2x128xf32>
    %51 = tpu.concatenate %12, %50 in 0 : vector<2x128xf32>, vector<2x128xf32> -> vector<4x128xf32>
    %52 = math.log %48 : vector<2x128xf32>
    %53 = arith.addf %1, %52 : vector<2x128xf32>
    %c1 = arith.constant 1 : index
    %c0_32 = arith.constant 0 : index
    %c0_33 = arith.constant 0 : index
    %54 = vector.load %arg7[%c1, %c0_32, %c0_33] : memref<3x80x1xf32, #tpu.memory_space<vmem>>, vector<1x80x1xf32>
    %55 = vector.shape_cast %54 : vector<1x80x1xf32> to vector<80x1xf32>
    %c1_34 = arith.constant 1 : index
    %c0_35 = arith.constant 0 : index
    %c0_36 = arith.constant 0 : index
    %56 = vector.load %arg3[%c1_34, %c0_35, %c0_36] : memref<3x4x4xf32, #tpu.memory_space<vmem>>, vector<1x4x4xf32>
    %57 = vector.shape_cast %56 : vector<1x4x4xf32> to vector<4x4xf32>
    %cst_37 = arith.constant dense<0.000000e+00> : vector<4x128xf32>
    %58 = tpu.matmul %57, %51, %cst_37 {dimension_numbers = #tpu.dot_dimension_numbers<[1], [0], [0], [1], [0, 0, 1, 1], [], []>} : vector<4x4xf32>, vector<4x128xf32>, vector<4x128xf32> -> vector<4x128xf32>
    %59 = vector.extract_strided_slice %55 {offsets = [0, 0], sizes = [4, 1], strides = [1, 1]} : vector<80x1xf32> to vector<4x1xf32>
    %60 = vector.broadcast %59 : vector<4x1xf32> to vector<4x128xf32>
    %61 = arith.addf %58, %60 : vector<4x128xf32>
    %62 = vector.extract_strided_slice %61 {offsets = [0, 0], sizes = [2, 128], strides = [1, 1]} : vector<4x128xf32> to vector<2x128xf32>
    %63 = vector.extract_strided_slice %61 {offsets = [2, 0], sizes = [2, 128], strides = [1, 1]} : vector<4x128xf32> to vector<2x128xf32>
    %c0_38 = arith.constant 0 : index
    %c0_39 = arith.constant 0 : index
    %64 = vector.load %arg10[%c0_38, %c0_39] : memref<6x128xf32, #tpu.memory_space<vmem>>, vector<2x128xf32>
    tpu.vector_store %arg10[%c0_38, %c0_39], %62 {strides = array<i32>} : memref<6x128xf32, #tpu.memory_space<vmem>>, vector<2x128xf32>,
    %c1_40 = arith.constant 1 : index
    %c0_41 = arith.constant 0 : index
    %c0_42 = arith.constant 0 : index
    %65 = vector.load %arg4[%c1_40, %c0_41, %c0_42] : memref<3x32x6xf32, #tpu.memory_space<vmem>>, vector<1x32x6xf32>
    %66 = vector.shape_cast %65 : vector<1x32x6xf32> to vector<32x6xf32>
    %c0_43 = arith.constant 0 : index
    %c0_44 = arith.constant 0 : index
    %67 = vector.load %arg10[%c0_43, %c0_44] : memref<6x128xf32, #tpu.memory_space<vmem>>, vector<6x128xf32>
    %cst_45 = arith.constant dense<0.000000e+00> : vector<32x128xf32>
    %68 = tpu.matmul %66, %67, %cst_45 {dimension_numbers = #tpu.dot_dimension_numbers<[1], [0], [0], [1], [0, 0, 1, 1], [], []>} : vector<32x6xf32>, vector<6x128xf32>, vector<32x128xf32> -> vector<32x128xf32>
    %69 = vector.extract_strided_slice %55 {offsets = [8, 0], sizes = [32, 1], strides = [1, 1]} : vector<80x1xf32> to vector<32x1xf32>
    %70 = vector.broadcast %69 : vector<32x1xf32> to vector<32x128xf32>
    %71 = arith.addf %68, %70 : vector<32x128xf32>
    %cst_46 = arith.constant 0.000000e+00 : f32
    %72 = vector.broadcast %cst_46 : f32 to vector<32x128xf32>
    %73 = arith.maximumf %71, %72 : vector<32x128xf32>
    %c1_47 = arith.constant 1 : index
    %c0_48 = arith.constant 0 : index
    %c0_49 = arith.constant 0 : index
    %74 = vector.load %arg5[%c1_47, %c0_48, %c0_49] : memref<3x32x32xf32, #tpu.memory_space<vmem>>, vector<1x32x32xf32>
    %75 = vector.shape_cast %74 : vector<1x32x32xf32> to vector<32x32xf32>
    %cst_50 = arith.constant dense<0.000000e+00> : vector<32x128xf32>
    %76 = tpu.matmul %75, %73, %cst_50 {dimension_numbers = #tpu.dot_dimension_numbers<[1], [0], [0], [1], [0, 0, 1, 1], [], []>} : vector<32x32xf32>, vector<32x128xf32>, vector<32x128xf32> -> vector<32x128xf32>
    %77 = vector.extract_strided_slice %55 {offsets = [40, 0], sizes = [32, 1], strides = [1, 1]} : vector<80x1xf32> to vector<32x1xf32>
    %78 = vector.broadcast %77 : vector<32x1xf32> to vector<32x128xf32>
    %79 = arith.addf %76, %78 : vector<32x128xf32>
    %cst_51 = arith.constant 0.000000e+00 : f32
    %80 = vector.broadcast %cst_51 : f32 to vector<32x128xf32>
    %81 = arith.maximumf %79, %80 : vector<32x128xf32>
    %c1_52 = arith.constant 1 : index
    %c0_53 = arith.constant 0 : index
    %c0_54 = arith.constant 0 : index
    %82 = vector.load %arg6[%c1_52, %c0_53, %c0_54] : memref<3x4x32xf32, #tpu.memory_space<vmem>>, vector<1x4x32xf32>
    %83 = vector.shape_cast %82 : vector<1x4x32xf32> to vector<4x32xf32>
    %cst_55 = arith.constant dense<0.000000e+00> : vector<4x128xf32>
    %84 = tpu.matmul %83, %81, %cst_55 {dimension_numbers = #tpu.dot_dimension_numbers<[1], [0], [0], [1], [0, 0, 1, 1], [], []>} : vector<4x32xf32>, vector<32x128xf32>, vector<4x128xf32> -> vector<4x128xf32>
    %85 = vector.extract_strided_slice %55 {offsets = [72, 0], sizes = [4, 1], strides = [1, 1]} : vector<80x1xf32> to vector<4x1xf32>
    %86 = vector.broadcast %85 : vector<4x1xf32> to vector<4x128xf32>
    %87 = arith.addf %84, %86 : vector<4x128xf32>
    %88 = vector.extract_strided_slice %87 {offsets = [0, 0], sizes = [2, 128], strides = [1, 1]} : vector<4x128xf32> to vector<2x128xf32>
    %89 = vector.extract_strided_slice %87 {offsets = [2, 0], sizes = [2, 128], strides = [1, 1]} : vector<4x128xf32> to vector<2x128xf32>
    %cst_56 = arith.constant 2.000000e+00 : f32
    %90 = vector.broadcast %cst_56 : f32 to vector<2x128xf32>
    %91 = arith.addf %89, %90 : vector<2x128xf32>
    %92 = arith.negf %91 : vector<2x128xf32>
    %93 = math.exp %92 : vector<2x128xf32>
    %cst_57 = arith.constant 1.000000e+00 : f32
    %94 = vector.broadcast %cst_57 : f32 to vector<2x128xf32>
    %95 = arith.addf %94, %93 : vector<2x128xf32>
    %96 = arith.divf %94, %95 : vector<2x128xf32>
    %cst_58 = arith.constant 9.99999997E-7 : f32
    %97 = vector.broadcast %cst_58 : f32 to vector<2x128xf32>
    %98 = arith.addf %96, %97 : vector<2x128xf32>
    %99 = arith.addf %63, %88 : vector<2x128xf32>
    %100 = arith.mulf %99, %98 : vector<2x128xf32>
    %101 = tpu.concatenate %62, %100 in 0 : vector<2x128xf32>, vector<2x128xf32> -> vector<4x128xf32>
    %102 = math.log %98 : vector<2x128xf32>
    %103 = arith.addf %53, %102 : vector<2x128xf32>
    %c2_59 = arith.constant 2 : index
    %c0_60 = arith.constant 0 : index
    %c0_61 = arith.constant 0 : index
    %104 = vector.load %arg7[%c2_59, %c0_60, %c0_61] : memref<3x80x1xf32, #tpu.memory_space<vmem>>, vector<1x80x1xf32>
    %105 = vector.shape_cast %104 : vector<1x80x1xf32> to vector<80x1xf32>
    %c2_62 = arith.constant 2 : index
    %c0_63 = arith.constant 0 : index
    %c0_64 = arith.constant 0 : index
    %106 = vector.load %arg3[%c2_62, %c0_63, %c0_64] : memref<3x4x4xf32, #tpu.memory_space<vmem>>, vector<1x4x4xf32>
    %107 = vector.shape_cast %106 : vector<1x4x4xf32> to vector<4x4xf32>
    %cst_65 = arith.constant dense<0.000000e+00> : vector<4x128xf32>
    %108 = tpu.matmul %107, %101, %cst_65 {dimension_numbers = #tpu.dot_dimension_numbers<[1], [0], [0], [1], [0, 0, 1, 1], [], []>} : vector<4x4xf32>, vector<4x128xf32>, vector<4x128xf32> -> vector<4x128xf32>
    %109 = vector.extract_strided_slice %105 {offsets = [0, 0], sizes = [4, 1], strides = [1, 1]} : vector<80x1xf32> to vector<4x1xf32>
    %110 = vector.broadcast %109 : vector<4x1xf32> to vector<4x128xf32>
    %111 = arith.addf %108, %110 : vector<4x128xf32>
    %112 = vector.extract_strided_slice %111 {offsets = [0, 0], sizes = [2, 128], strides = [1, 1]} : vector<4x128xf32> to vector<2x128xf32>
    %113 = vector.extract_strided_slice %111 {offsets = [2, 0], sizes = [2, 128], strides = [1, 1]} : vector<4x128xf32> to vector<2x128xf32>
    %c0_66 = arith.constant 0 : index
    %c0_67 = arith.constant 0 : index
    %114 = vector.load %arg10[%c0_66, %c0_67] : memref<6x128xf32, #tpu.memory_space<vmem>>, vector<2x128xf32>
    tpu.vector_store %arg10[%c0_66, %c0_67], %112 {strides = array<i32>} : memref<6x128xf32, #tpu.memory_space<vmem>>, vector<2x128xf32>,
    %c2_68 = arith.constant 2 : index
    %c0_69 = arith.constant 0 : index
    %c0_70 = arith.constant 0 : index
    %115 = vector.load %arg4[%c2_68, %c0_69, %c0_70] : memref<3x32x6xf32, #tpu.memory_space<vmem>>, vector<1x32x6xf32>
    %116 = vector.shape_cast %115 : vector<1x32x6xf32> to vector<32x6xf32>
    %c0_71 = arith.constant 0 : index
    %c0_72 = arith.constant 0 : index
    %117 = vector.load %arg10[%c0_71, %c0_72] : memref<6x128xf32, #tpu.memory_space<vmem>>, vector<6x128xf32>
    %cst_73 = arith.constant dense<0.000000e+00> : vector<32x128xf32>
    %118 = tpu.matmul %116, %117, %cst_73 {dimension_numbers = #tpu.dot_dimension_numbers<[1], [0], [0], [1], [0, 0, 1, 1], [], []>} : vector<32x6xf32>, vector<6x128xf32>, vector<32x128xf32> -> vector<32x128xf32>
    %119 = vector.extract_strided_slice %105 {offsets = [8, 0], sizes = [32, 1], strides = [1, 1]} : vector<80x1xf32> to vector<32x1xf32>
    %120 = vector.broadcast %119 : vector<32x1xf32> to vector<32x128xf32>
    %121 = arith.addf %118, %120 : vector<32x128xf32>
    %cst_74 = arith.constant 0.000000e+00 : f32
    %122 = vector.broadcast %cst_74 : f32 to vector<32x128xf32>
    %123 = arith.maximumf %121, %122 : vector<32x128xf32>
    %c2_75 = arith.constant 2 : index
    %c0_76 = arith.constant 0 : index
    %c0_77 = arith.constant 0 : index
    %124 = vector.load %arg5[%c2_75, %c0_76, %c0_77] : memref<3x32x32xf32, #tpu.memory_space<vmem>>, vector<1x32x32xf32>
    %125 = vector.shape_cast %124 : vector<1x32x32xf32> to vector<32x32xf32>
    %cst_78 = arith.constant dense<0.000000e+00> : vector<32x128xf32>
    %126 = tpu.matmul %125, %123, %cst_78 {dimension_numbers = #tpu.dot_dimension_numbers<[1], [0], [0], [1], [0, 0, 1, 1], [], []>} : vector<32x32xf32>, vector<32x128xf32>, vector<32x128xf32> -> vector<32x128xf32>
    %127 = vector.extract_strided_slice %105 {offsets = [40, 0], sizes = [32, 1], strides = [1, 1]} : vector<80x1xf32> to vector<32x1xf32>
    %128 = vector.broadcast %127 : vector<32x1xf32> to vector<32x128xf32>
    %129 = arith.addf %126, %128 : vector<32x128xf32>
    %cst_79 = arith.constant 0.000000e+00 : f32
    %130 = vector.broadcast %cst_79 : f32 to vector<32x128xf32>
    %131 = arith.maximumf %129, %130 : vector<32x128xf32>
    %c2_80 = arith.constant 2 : index
    %c0_81 = arith.constant 0 : index
    %c0_82 = arith.constant 0 : index
    %132 = vector.load %arg6[%c2_80, %c0_81, %c0_82] : memref<3x4x32xf32, #tpu.memory_space<vmem>>, vector<1x4x32xf32>
    %133 = vector.shape_cast %132 : vector<1x4x32xf32> to vector<4x32xf32>
    %cst_83 = arith.constant dense<0.000000e+00> : vector<4x128xf32>
    %134 = tpu.matmul %133, %131, %cst_83 {dimension_numbers = #tpu.dot_dimension_numbers<[1], [0], [0], [1], [0, 0, 1, 1], [], []>} : vector<4x32xf32>, vector<32x128xf32>, vector<4x128xf32> -> vector<4x128xf32>
    %135 = vector.extract_strided_slice %105 {offsets = [72, 0], sizes = [4, 1], strides = [1, 1]} : vector<80x1xf32> to vector<4x1xf32>
    %136 = vector.broadcast %135 : vector<4x1xf32> to vector<4x128xf32>
    %137 = arith.addf %134, %136 : vector<4x128xf32>
    %138 = vector.extract_strided_slice %137 {offsets = [0, 0], sizes = [2, 128], strides = [1, 1]} : vector<4x128xf32> to vector<2x128xf32>
    %139 = vector.extract_strided_slice %137 {offsets = [2, 0], sizes = [2, 128], strides = [1, 1]} : vector<4x128xf32> to vector<2x128xf32>
    %cst_84 = arith.constant 2.000000e+00 : f32
    %140 = vector.broadcast %cst_84 : f32 to vector<2x128xf32>
    %141 = arith.addf %139, %140 : vector<2x128xf32>
    %142 = arith.negf %141 : vector<2x128xf32>
    %143 = math.exp %142 : vector<2x128xf32>
    %cst_85 = arith.constant 1.000000e+00 : f32
    %144 = vector.broadcast %cst_85 : f32 to vector<2x128xf32>
    %145 = arith.addf %144, %143 : vector<2x128xf32>
    %146 = arith.divf %144, %145 : vector<2x128xf32>
    %cst_86 = arith.constant 9.99999997E-7 : f32
    %147 = vector.broadcast %cst_86 : f32 to vector<2x128xf32>
    %148 = arith.addf %146, %147 : vector<2x128xf32>
    %149 = arith.addf %113, %138 : vector<2x128xf32>
    %150 = arith.mulf %149, %148 : vector<2x128xf32>
    %151 = tpu.concatenate %112, %150 in 0 : vector<2x128xf32>, vector<2x128xf32> -> vector<4x128xf32>
    %152 = math.log %148 : vector<2x128xf32>
    %153 = arith.addf %103, %152 : vector<2x128xf32>
    %c0_87 = arith.constant 0 : index
    %c0_88 = arith.constant 0 : index
    %154 = vector.load %arg8[%c0_87, %c0_88] : memref<4x128xf32, #tpu.memory_space<vmem>>, vector<4x128xf32>
    tpu.vector_store %arg8[%c0_87, %c0_88], %151 {strides = array<i32>} : memref<4x128xf32, #tpu.memory_space<vmem>>, vector<4x128xf32>,
    %c0_89 = arith.constant 0 : index
    %c0_90 = arith.constant 0 : index
    %155 = vector.load %arg9[%c0_89, %c0_90] : memref<2x128xf32, #tpu.memory_space<vmem>>, vector<2x128xf32>
    tpu.vector_store %arg9[%c0_89, %c0_90], %153 {strides = array<i32>} : memref<2x128xf32, #tpu.memory_space<vmem>>, vector<2x128xf32>,
    return
  }
  func.func @transform_0(%arg0: i32) -> (i32, i32) {
    %c0_i32 = arith.constant 0 : i32
    %c0_i32_0 = arith.constant 0 : i32
    return %c0_i32, %arg0 : i32, i32
  }
  func.func @transform_1(%arg0: i32) -> (i32, i32) {
    %c0_i32 = arith.constant 0 : i32
    %c0_i32_0 = arith.constant 0 : i32
    return %c0_i32, %arg0 : i32, i32
  }
  func.func @transform_2(%arg0: i32) -> (i32, i32, i32) {
    %c0_i32 = arith.constant 0 : i32
    %c0_i32_0 = arith.constant 0 : i32
    %c0_i32_1 = arith.constant 0 : i32
    %c0_i32_2 = arith.constant 0 : i32
    return %c0_i32, %c0_i32_0, %c0_i32_1 : i32, i32, i32
  }
  func.func @transform_3(%arg0: i32) -> (i32, i32, i32) {
    %c0_i32 = arith.constant 0 : i32
    %c0_i32_0 = arith.constant 0 : i32
    %c0_i32_1 = arith.constant 0 : i32
    %c0_i32_2 = arith.constant 0 : i32
    return %c0_i32, %c0_i32_0, %c0_i32_1 : i32, i32, i32
  }
  func.func @transform_4(%arg0: i32) -> (i32, i32, i32) {
    %c0_i32 = arith.constant 0 : i32
    %c0_i32_0 = arith.constant 0 : i32
    %c0_i32_1 = arith.constant 0 : i32
    %c0_i32_2 = arith.constant 0 : i32
    return %c0_i32, %c0_i32_0, %c0_i32_1 : i32, i32, i32
  }
  func.func @transform_5(%arg0: i32) -> (i32, i32, i32) {
    %c0_i32 = arith.constant 0 : i32
    %c0_i32_0 = arith.constant 0 : i32
    %c0_i32_1 = arith.constant 0 : i32
    %c0_i32_2 = arith.constant 0 : i32
    return %c0_i32, %c0_i32_0, %c0_i32_1 : i32, i32, i32
  }
  func.func @transform_6(%arg0: i32) -> (i32, i32, i32) {
    %c0_i32 = arith.constant 0 : i32
    %c0_i32_0 = arith.constant 0 : i32
    %c0_i32_1 = arith.constant 0 : i32
    %c0_i32_2 = arith.constant 0 : i32
    return %c0_i32, %c0_i32_0, %c0_i32_1 : i32, i32, i32
  }
  func.func @transform_7(%arg0: i32) -> (i32, i32) {
    %c0_i32 = arith.constant 0 : i32
    %c0_i32_0 = arith.constant 0 : i32
    return %c0_i32, %arg0 : i32, i32
  }
  func.func @transform_8(%arg0: i32) -> (i32, i32) {
    %c0_i32 = arith.constant 0 : i32
    %c0_i32_0 = arith.constant 0 : i32
    return %c0_i32, %arg0 : i32, i32
  }
}

</mosaic_0001>

<llo_original>
// kernel: tpu_custom_call.1
$region0: #{tpu_custom_call.1}
  #allocation0 [shape = 'u32[]', space=smem, size = 0x4, offset = 0x4, fixed_abs, tag = 'smem constant byte address 0x4 - core index']
  #allocation1 [shape = 'u32[72,128]{1,0:T(1,128)}', space=vmem, size = 0x9000, scoped, tag = 'internal scratch']
  #allocation2 [shape = 'f32[6,128]{1,0:T(8,128)}', space=vmem, size = 0x1000, scoped, tag = 'scratch operand']
  %s0 = inlined_call_operand.hbm [shape: f32[4,128], index: 0, kind: input, shape index: {}, may-alias: {0,7}]
  %s1 = inlined_call_operand.vmem [shape: f32[4,128], index: 1, kind: input, shape index: {}]
  %s2 = inlined_call_operand.vmem [shape: f32[3,4,4], index: 2, kind: input, shape index: {}]
  %s3 = inlined_call_operand.vmem [shape: f32[3,32,6], index: 3, kind: input, shape index: {}]
  %s4 = inlined_call_operand.vmem [shape: f32[3,32,32], index: 4, kind: input, shape index: {}]
  %s5 = inlined_call_operand.vmem [shape: f32[3,4,32], index: 5, kind: input, shape index: {}]
  %s6 = inlined_call_operand.vmem [shape: f32[3,80,1], index: 6, kind: input, shape index: {}]
  %s7 = inlined_call_operand.hbm [shape: f32[4,128], index: 7, kind: output, shape index: {0}, may-alias: {0,7}]
  %s8 = inlined_call_operand.hbm [shape: f32[2,128], index: 8, kind: output, shape index: {1}]
  %9 = xla_tuple %s7, %s8
  %s10 = sld [smem:[#allocation0]]
  $region50: #{tpu_custom_call.1} parent=0
    _
  %s12 = ssub.s32 1, %s10
  %s13 = scalar_select 0, %s12, %s10
  $region1: #{tpu_custom_call.1} parent=0
    #allocation3 [shape = 'u8[2048]{0}', space=vmem, size = 0x800, scoped, tag = 'input window, operand 0, single buffered']
    #allocation4 [shape = 's32[1]{0}', space=sflag, size = 0x4, scoped, tag = 'scoped memory for tpu_custom_call.1']
    #allocation5 [shape = 's32[1]{0}', space=sflag, size = 0x4, scoped, tag = 'scoped memory for tpu_custom_call.1']
    #allocation6 [shape = 'u8[2048]{0}', space=vmem, size = 0x800, scoped, tag = 'output window, operand 0, single buffered']
    #allocation7 [shape = 'u8[1024]{0}', space=vmem, size = 0x400, scoped, tag = 'output window, operand 1, single buffered']
    #allocation8 [shape = 's32[1]{0}', space=sflag, size = 0x4, scoped, tag = 'scoped memory for tpu_custom_call.1']
    %14 = vsyncpa [#allocation4], 0
    %15 = vsyncpa [#allocation5], 0
    %16 = vsyncpa [#allocation8], 0
    // Predicated region
    $region2: #{tpu_custom_call.1} parent=1 // pred_check
      _
    $region3: #{tpu_custom_call.1} parent=1 // pred_check_branch
      %18 = sbr.rel (0) target = $region5
    $region4: #{tpu_custom_call.1} parent=1 // pred_region
      %20 = vsyncadd [#allocation4], 0
      %s22 = sshll.u32 %s0, 4
      %s23 = int_to_ptr.hbm [resolvable:$true] %s22
      %s24 = sshll.u32 [#allocation3], 4
      %s25 = int_to_ptr.vmem [resolvable:$true] %s24
      %27 = dma.hbm_to_vmem [thread:$0]  %s23, 64, %s25, [#allocation4]
    $region5: #{tpu_custom_call.1} parent=1 // pred_fallthru
      _
    // Predicated region
    $region6: #{tpu_custom_call.1} parent=1 // pred_check
      _
    $region7: #{tpu_custom_call.1} parent=1 // pred_check_branch
      %29 = sbr.rel (0) target = $region9
    $region8: #{tpu_custom_call.1} parent=1 // pred_region
      _
    $region9: #{tpu_custom_call.1} parent=1 // pred_fallthru
      _
    // Predicated region
    $region10: #{tpu_custom_call.1} parent=1 // pred_check
      _
    $region11: #{tpu_custom_call.1} parent=1 // pred_check_branch
      %31 = sbr.rel (0) target = $region13
    $region12: #{tpu_custom_call.1} parent=1 // pred_region
      _
    $region13: #{tpu_custom_call.1} parent=1 // pred_fallthru
      _
    // Predicated region
    $region14: #{tpu_custom_call.1} parent=1 // pred_check
      _
    $region15: #{tpu_custom_call.1} parent=1 // pred_check_branch
      %33 = sbr.rel (0) target = $region17
    $region16: #{tpu_custom_call.1} parent=1 // pred_region
      _
    $region17: #{tpu_custom_call.1} parent=1 // pred_fallthru
      _
    // Predicated region
    $region18: #{tpu_custom_call.1} parent=1 // pred_check
      _
    $region19: #{tpu_custom_call.1} parent=1 // pred_check_branch
      %35 = sbr.rel (0) target = $region21
    $region20: #{tpu_custom_call.1} parent=1 // pred_region
      _
    $region21: #{tpu_custom_call.1} parent=1 // pred_fallthru
      _
    // Predicated region
    $region22: #{tpu_custom_call.1} parent=1 // pred_check
      _
    $region23: #{tpu_custom_call.1} parent=1 // pred_check_branch
      %37 = sbr.rel (0) target = $region25
    $region24: #{tpu_custom_call.1} parent=1 // pred_region
      _
    $region25: #{tpu_custom_call.1} parent=1 // pred_fallthru
      _
    // Predicated region
    $region26: #{tpu_custom_call.1} parent=1 // pred_check
      _
    $region27: #{tpu_custom_call.1} parent=1 // pred_check_branch
      %39 = sbr.rel (0) target = $region29
    $region28: #{tpu_custom_call.1} parent=1 // pred_region
      _
    $region29: #{tpu_custom_call.1} parent=1 // pred_fallthru
      _
    // Predicated region
    $region30: #{tpu_custom_call.1} parent=1 // pred_check
      _
    $region31: #{tpu_custom_call.1} parent=1 // pred_check_branch
      %41 = sbr.rel (0) target = $region33
    $region32: #{tpu_custom_call.1} parent=1 // pred_region
      %43 = dma.done [#allocation4], 64
    $region33: #{tpu_custom_call.1} parent=1 // pred_fallthru
      _
    %v44 = vld [vmem:[#allocation3] sm:$0xf]
    %v45 = vld [vmem:[%s1] sm:$0xf]
    %46 = vst [vmem:[#allocation2 + $0x2] sm:$0xf] %v45
    %v47 = vld [vmem:[%s6] sm:$0xff]
    %v48 = vld [vmem:[%s6 + $0x8] sm:$0xff]
    %v49 = vld [vmem:[%s6 + $0x10] sm:$0xff]
    %v50 = vld [vmem:[%s6 + $0x18] sm:$0xff]
    %v51 = vld [vmem:[%s6 + $0x20] sm:$0xff]
    %v52 = vld [vmem:[%s6 + $0x28] sm:$0xff]
    %v53 = vld [vmem:[%s6 + $0x30] sm:$0xff]
    %v54 = vld [vmem:[%s6 + $0x38] sm:$0xff]
    %v55 = vld [vmem:[%s6 + $0x40] sm:$0xff]
    %v56 = vld [vmem:[%s6 + $0x48] sm:$0xff]
    %v57 = vld [vmem:[%s2] sm:$0xf]
    %59 = vset.pattern.permute.xlu0 0
    %60 = vperm.xlu0 %59, %v47
    %v61 = vpop.permute.xlu0 %60
    %vm63 = vcmask 31744
    %v65 = vsel %vm63, %v57, 0
    %vm67 = vcmask 1043456
    %v69 = vsel %vm67, %v44, 0
    %71 = vmatpush.msra.mxu0 0.0
    %72 = vmatpush.msra.mxu0 0.0
    %73 = vmatpush.msra.mxu0 0.0
    %74 = vmatpush.msra.mxu0 0.0
    %75 = vmatpush.msra.mxu0 0.0
    %76 = vmatpush.msra.mxu0 0.0
    %77 = vmatpush.msra.mxu0 0.0
    %78 = vmatpush.msra.mxu0 0.0
    %79 = vmatpush.msra.mxu0 0.0
    %80 = vmatpush.msra.mxu0 0.0
    %81 = vmatpush.msra.mxu0 0.0
    %82 = vmatpush.msra.mxu0 0.0
    %83 = vmatpush.msra.mxu0 0.0
    %84 = vmatpush.msra.mxu0 0.0
    %85 = vmatpush.msra.mxu0 0.0
    %86 = vmatpush.msra.mxu0 %v69
    %87 = vmatmul.f32.gmra.mxu0 %v65
    %v88 = vpop.f32.mrf.mxu0
    %v89 = vadd.f32 %v61, %v88
    %90 = vdwg.mxu0
    %91 = vst [vmem:[#allocation2] sm:$0x3] %v89
    %v92 = vld [vmem:[%s3] sm:$0xff]
    %v93 = vld [vmem:[%s3 + $0x8] sm:$0xff]
    %v94 = vld [vmem:[%s3 + $0x10] sm:$0xff]
    %v95 = vld [vmem:[%s3 + $0x18] sm:$0xff]
    %v96 = vld [vmem:[#allocation2] sm:$0x3f]
    %98 = vset.pattern.permute.xlu0 0
    %99 = vperm.xlu0 %98, %v48
    %v100 = vpop.permute.xlu0 %99
    %103 = vset.pattern.permute.xlu0 0
    %104 = vperm.xlu0 %103, %v49
    %v105 = vpop.permute.xlu0 %104
    %108 = vset.pattern.permute.xlu0 0
    %109 = vperm.xlu0 %108, %v50
    %v110 = vpop.permute.xlu0 %109
    %113 = vset.pattern.permute.xlu0 0
    %114 = vperm.xlu0 %113, %v51
    %v115 = vpop.permute.xlu0 %114
    %vm117 = vcmask 48128
    %v119 = vsel %vm117, %v92, 0
    %v122 = vsel %vm117, %v93, 0
    %v125 = vsel %vm117, %v94, 0
    %v128 = vsel %vm117, %v95, 0
    %vm130 = vcmask 1045504
    %v132 = vsel %vm130, %v96, 0
    %134 = vmatpush.msra.mxu0 0.0
    %135 = vmatpush.msra.mxu0 0.0
    %136 = vmatpush.msra.mxu0 0.0
    %137 = vmatpush.msra.mxu0 0.0
    %138 = vmatpush.msra.mxu0 0.0
    %139 = vmatpush.msra.mxu0 0.0
    %140 = vmatpush.msra.mxu0 0.0
    %141 = vmatpush.msra.mxu0 0.0
    %142 = vmatpush.msra.mxu0 0.0
    %143 = vmatpush.msra.mxu0 0.0
    %144 = vmatpush.msra.mxu0 0.0
    %145 = vmatpush.msra.mxu0 0.0
    %146 = vmatpush.msra.mxu0 0.0
    %147 = vmatpush.msra.mxu0 0.0
    %148 = vmatpush.msra.mxu0 0.0
    %149 = vmatpush.msra.mxu0 %v132
    %150 = vmatmul.f32.gmra.mxu0 %v119
    %v151 = vpop.f32.mrf.mxu0
    %v152 = vadd.f32 %v100, %v151
    %153 = vmatmul.f32.gmra.mxu0 %v122
    %v154 = vpop.f32.mrf.mxu0
    %v155 = vadd.f32 %v105, %v154
    %156 = vmatmul.f32.gmra.mxu0 %v125
    %v157 = vpop.f32.mrf.mxu0
    %v158 = vadd.f32 %v110, %v157
    %159 = vmatmul.f32.gmra.mxu0 %v128
    %v160 = vpop.f32.mrf.mxu0
    %v161 = vadd.f32 %v115, %v160
    %162 = vdwg.mxu0
    %v163 = vmax.f32 %v152, 0.0
    %v164 = vmax.f32 %v155, 0.0
    %v165 = vmax.f32 %v158, 0.0
    %v166 = vmax.f32 %v161, 0.0
    %v167 = vld [vmem:[%s4] sm:$0xff]
    %v168 = vld [vmem:[%s4 + $0x8] sm:$0xff]
    %v169 = vld [vmem:[%s4 + $0x10] sm:$0xff]
    %v170 = vld [vmem:[%s4 + $0x18] sm:$0xff]
    %172 = vset.pattern.permute.xlu0 0
    %173 = vperm.xlu0 %172, %v52
    %v174 = vpop.permute.xlu0 %173
    %177 = vset.pattern.permute.xlu0 0
    %178 = vperm.xlu0 %177, %v53
    %v179 = vpop.permute.xlu0 %178
    %182 = vset.pattern.permute.xlu0 0
    %183 = vperm.xlu0 %182, %v54
    %v184 = vpop.permute.xlu0 %183
    %187 = vset.pattern.permute.xlu0 0
    %188 = vperm.xlu0 %187, %v55
    %v189 = vpop.permute.xlu0 %188
    %vm191 = vcmask 261120
    %v193 = vsel %vm191, %v167, 0
    %v196 = vsel %vm191, %v168, 0
    %v199 = vsel %vm191, %v169, 0
    %v202 = vsel %vm191, %v170, 0
    %204 = vmatpush.msra.mxu0 0.0
    %205 = vmatpush.msra.mxu0 0.0
    %206 = vmatpush.msra.mxu0 0.0
    %207 = vmatpush.msra.mxu0 0.0
    %208 = vmatpush.msra.mxu0 0.0
    %209 = vmatpush.msra.mxu0 0.0
    %210 = vmatpush.msra.mxu0 0.0
    %211 = vmatpush.msra.mxu0 0.0
    %212 = vmatpush.msra.mxu0 0.0
    %213 = vmatpush.msra.mxu0 0.0
    %214 = vmatpush.msra.mxu0 0.0
    %215 = vmatpush.msra.mxu0 0.0
    %216 = vmatpush.msra.mxu0 %v166
    %217 = vmatpush.msra.mxu0 %v165
    %218 = vmatpush.msra.mxu0 %v164
    %219 = vmatpush.msra.mxu0 %v163
    %220 = vmatmul.f32.gmra.mxu0 %v193
    %v221 = vpop.f32.mrf.mxu0
    %v222 = vadd.f32 %v174, %v221
    %223 = vmatmul.f32.gmra.mxu0 %v196
    %v224 = vpop.f32.mrf.mxu0
    %v225 = vadd.f32 %v179, %v224
    %226 = vmatmul.f32.gmra.mxu0 %v199
    %v227 = vpop.f32.mrf.mxu0
    %v228 = vadd.f32 %v184, %v227
    %229 = vmatmul.f32.gmra.mxu0 %v202
    %v230 = vpop.f32.mrf.mxu0
    %v231 = vadd.f32 %v189, %v230
    %232 = vdwg.mxu0
    %v233 = vmax.f32 %v222, 0.0
    %v234 = vmax.f32 %v225, 0.0
    %v235 = vmax.f32 %v228, 0.0
    %v236 = vmax.f32 %v231, 0.0
    %v237 = vld [vmem:[%s5] sm:$0xf]
    %239 = vset.pattern.permute.xlu0 0
    %240 = vperm.xlu0 %239, %v56
    %v241 = vpop.permute.xlu0 %240
    %v244 = vsel %vm191, %v237, 0
    %246 = vmatpush.msra.mxu0 0.0
    %247 = vmatpush.msra.mxu0 0.0
    %248 = vmatpush.msra.mxu0 0.0
    %249 = vmatpush.msra.mxu0 0.0
    %250 = vmatpush.msra.mxu0 0.0
    %251 = vmatpush.msra.mxu0 0.0
    %252 = vmatpush.msra.mxu0 0.0
    %253 = vmatpush.msra.mxu0 0.0
    %254 = vmatpush.msra.mxu0 0.0
    %255 = vmatpush.msra.mxu0 0.0
    %256 = vmatpush.msra.mxu0 0.0
    %257 = vmatpush.msra.mxu0 0.0
    %258 = vmatpush.msra.mxu0 %v236
    %259 = vmatpush.msra.mxu0 %v235
    %260 = vmatpush.msra.mxu0 %v234
    %261 = vmatpush.msra.mxu0 %v233
    %262 = vmatmul.f32.gmra.mxu0 %v244
    %v263 = vpop.f32.mrf.mxu0
    %v264 = vadd.f32 %v241, %v263
    %265 = vdwg.mxu0
    %v266 = vadd.f32 %v264, 2.0
    %v267 = vxor.u32 %v266, 2147483648
    %v268 = vmul.f32 %v267, 1.442695
    %v269 = vpow.pop %v268
    %v270 = vadd.f32 %v269, 1.0
    %v271 = vrcp.pop %v270
    %v272 = vmul.f32 %v270, %v271
    %v273 = vsub.f32 1.0, %v272
    %v274 = vmul.f32 %v271, %v273
    %v275 = vadd.f32 %v271, %v274
    %vm276 = vweird.f32 %v270
    %vm277 = vweird.f32 %v271
    %vm278 = vmor %vm276, %vm277
    %v279 = vsel %vm278, %v271, %v275
    %v280 = vand.u32 2147483647, %v270
    %vm281 = vcmp.eq.f32.partialorder %v280, 8.507059e+37
    %v282 = vand.u32 %v270, 2147483648
    %v283 = vor.u32 1.1754944e-38, %v282
    %v284 = vsel %vm281, %v283, %v279
    %v285 = vmul.f32 1.0, %v284
    %v286 = vadd.f32 %v285, 1e-06
    %v288 = vrot.slane %v264, 6
    %v290 = vadd.f32 %v89, %v288
    %v291 = vmul.f32 %v290, %v286
    %vm292 = vcmask 1041408
    %v293 = vsel %vm292, %v89, %v291
    %v294 = vlog2.pop %v286
    %v295 = vmul.f32 %v294, 0.6931472
    %v296 = vadd.f32 %v295, 0.0
    %s297 = scalar_lea.vmem %s6, 80
    %v298 = vld [vmem:[%s297] sm:$0xff]
    %v299 = vld [vmem:[%s297 + $0x8] sm:$0xff]
    %v300 = vld [vmem:[%s297 + $0x10] sm:$0xff]
    %v301 = vld [vmem:[%s297 + $0x18] sm:$0xff]
    %v302 = vld [vmem:[%s297 + $0x20] sm:$0xff]
    %v303 = vld [vmem:[%s297 + $0x28] sm:$0xff]
    %v304 = vld [vmem:[%s297 + $0x30] sm:$0xff]
    %v305 = vld [vmem:[%s297 + $0x38] sm:$0xff]
    %v306 = vld [vmem:[%s297 + $0x40] sm:$0xff]
    %v307 = vld [vmem:[%s297 + $0x48] sm:$0xff]
    %s308 = scalar_lea.vmem %s2, 4
    %v309 = vld [vmem:[%s308] sm:$0xf]
    %311 = vset.pattern.permute.xlu0 0
    %312 = vperm.xlu0 %311, %v298
    %v313 = vpop.permute.xlu0 %312
    %v316 = vsel %vm63, %v309, 0
    %v319 = vsel %vm67, %v293, 0
    %321 = vmatpush.msra.mxu0 0.0
    %322 = vmatpush.msra.mxu0 0.0
    %323 = vmatpush.msra.mxu0 0.0
    %324 = vmatpush.msra.mxu0 0.0
    %325 = vmatpush.msra.mxu0 0.0
    %326 = vmatpush.msra.mxu0 0.0
    %327 = vmatpush.msra.mxu0 0.0
    %328 = vmatpush.msra.mxu0 0.0
    %329 = vmatpush.msra.mxu0 0.0
    %330 = vmatpush.msra.mxu0 0.0
    %331 = vmatpush.msra.mxu0 0.0
    %332 = vmatpush.msra.mxu0 0.0
    %333 = vmatpush.msra.mxu0 0.0
    %334 = vmatpush.msra.mxu0 0.0
    %335 = vmatpush.msra.mxu0 0.0
    %336 = vmatpush.msra.mxu0 %v319
    %337 = vmatmul.f32.gmra.mxu0 %v316
    %v338 = vpop.f32.mrf.mxu0
    %v339 = vadd.f32 %v313, %v338
    %340 = vdwg.mxu0
    %341 = vst [vmem:[#allocation2] sm:$0x3] %v339
    %s342 = scalar_lea.vmem %s3, 32
    %v343 = vld [vmem:[%s342] sm:$0xff]
    %v344 = vld [vmem:[%s342 + $0x8] sm:$0xff]
    %v345 = vld [vmem:[%s342 + $0x10] sm:$0xff]
    %v346 = vld [vmem:[%s342 + $0x18] sm:$0xff]
    %v347 = vld [vmem:[#allocation2] sm:$0x3f]
    %349 = vset.pattern.permute.xlu0 0
    %350 = vperm.xlu0 %349, %v299
    %v351 = vpop.permute.xlu0 %350
    %354 = vset.pattern.permute.xlu0 0
    %355 = vperm.xlu0 %354, %v300
    %v356 = vpop.permute.xlu0 %355
    %359 = vset.pattern.permute.xlu0 0
    %360 = vperm.xlu0 %359, %v301
    %v361 = vpop.permute.xlu0 %360
    %364 = vset.pattern.permute.xlu0 0
    %365 = vperm.xlu0 %364, %v302
    %v366 = vpop.permute.xlu0 %365
    %v369 = vsel %vm117, %v343, 0
    %v372 = vsel %vm117, %v344, 0
    %v375 = vsel %vm117, %v345, 0
    %v378 = vsel %vm117, %v346, 0
    %v381 = vsel %vm130, %v347, 0
    %383 = vmatpush.msra.mxu0 0.0
    %384 = vmatpush.msra.mxu0 0.0
    %385 = vmatpush.msra.mxu0 0.0
    %386 = vmatpush.msra.mxu0 0.0
    %387 = vmatpush.msra.mxu0 0.0
    %388 = vmatpush.msra.mxu0 0.0
    %389 = vmatpush.msra.mxu0 0.0
    %390 = vmatpush.msra.mxu0 0.0
    %391 = vmatpush.msra.mxu0 0.0
    %392 = vmatpush.msra.mxu0 0.0
    %393 = vmatpush.msra.mxu0 0.0
    %394 = vmatpush.msra.mxu0 0.0
    %395 = vmatpush.msra.mxu0 0.0
    %396 = vmatpush.msra.mxu0 0.0
    %397 = vmatpush.msra.mxu0 0.0
    %398 = vmatpush.msra.mxu0 %v381
    %399 = vmatmul.f32.gmra.mxu0 %v369
    %v400 = vpop.f32.mrf.mxu0
    %v401 = vadd.f32 %v351, %v400
    %402 = vmatmul.f32.gmra.mxu0 %v372
    %v403 = vpop.f32.mrf.mxu0
    %v404 = vadd.f32 %v356, %v403
    %405 = vmatmul.f32.gmra.mxu0 %v375
    %v406 = vpop.f32.mrf.mxu0
    %v407 = vadd.f32 %v361, %v406
    %408 = vmatmul.f32.gmra.mxu0 %v378
    %v409 = vpop.f32.mrf.mxu0
    %v410 = vadd.f32 %v366, %v409
    %411 = vdwg.mxu0
    %v412 = vmax.f32 %v401, 0.0
    %v413 = vmax.f32 %v404, 0.0
    %v414 = vmax.f32 %v407, 0.0
    %v415 = vmax.f32 %v410, 0.0
    %s416 = scalar_lea.vmem %s4, 32
    %v417 = vld [vmem:[%s416] sm:$0xff]
    %v418 = vld [vmem:[%s416 + $0x8] sm:$0xff]
    %v419 = vld [vmem:[%s416 + $0x10] sm:$0xff]
    %v420 = vld [vmem:[%s416 + $0x18] sm:$0xff]
    %422 = vset.pattern.permute.xlu0 0
    %423 = vperm.xlu0 %422, %v303
    %v424 = vpop.permute.xlu0 %423
    %427 = vset.pattern.permute.xlu0 0
    %428 = vperm.xlu0 %427, %v304
    %v429 = vpop.permute.xlu0 %428
    %432 = vset.pattern.permute.xlu0 0
    %433 = vperm.xlu0 %432, %v305
    %v434 = vpop.permute.xlu0 %433
    %437 = vset.pattern.permute.xlu0 0
    %438 = vperm.xlu0 %437, %v306
    %v439 = vpop.permute.xlu0 %438
    %v442 = vsel %vm191, %v417, 0
    %v445 = vsel %vm191, %v418, 0
    %v448 = vsel %vm191, %v419, 0
    %v451 = vsel %vm191, %v420, 0
    %453 = vmatpush.msra.mxu0 0.0
    %454 = vmatpush.msra.mxu0 0.0
    %455 = vmatpush.msra.mxu0 0.0
    %456 = vmatpush.msra.mxu0 0.0
    %457 = vmatpush.msra.mxu0 0.0
    %458 = vmatpush.msra.mxu0 0.0
    %459 = vmatpush.msra.mxu0 0.0
    %460 = vmatpush.msra.mxu0 0.0
    %461 = vmatpush.msra.mxu0 0.0
    %462 = vmatpush.msra.mxu0 0.0
    %463 = vmatpush.msra.mxu0 0.0
    %464 = vmatpush.msra.mxu0 0.0
    %465 = vmatpush.msra.mxu0 %v415
    %466 = vmatpush.msra.mxu0 %v414
    %467 = vmatpush.msra.mxu0 %v413
    %468 = vmatpush.msra.mxu0 %v412
    %469 = vmatmul.f32.gmra.mxu0 %v442
    %v470 = vpop.f32.mrf.mxu0
    %v471 = vadd.f32 %v424, %v470
    %472 = vmatmul.f32.gmra.mxu0 %v445
    %v473 = vpop.f32.mrf.mxu0
    %v474 = vadd.f32 %v429, %v473
    %475 = vmatmul.f32.gmra.mxu0 %v448
    %v476 = vpop.f32.mrf.mxu0
    %v477 = vadd.f32 %v434, %v476
    %478 = vmatmul.f32.gmra.mxu0 %v451
    %v479 = vpop.f32.mrf.mxu0
    %v480 = vadd.f32 %v439, %v479
    %481 = vdwg.mxu0
    %v482 = vmax.f32 %v471, 0.0
    %v483 = vmax.f32 %v474, 0.0
    %v484 = vmax.f32 %v477, 0.0
    %v485 = vmax.f32 %v480, 0.0
    %s486 = scalar_lea.vmem %s5, 4
    %v487 = vld [vmem:[%s486] sm:$0xf]
    %489 = vset.pattern.permute.xlu0 0
    %490 = vperm.xlu0 %489, %v307
    %v491 = vpop.permute.xlu0 %490
    %v494 = vsel %vm191, %v487, 0
    %496 = vmatpush.msra.mxu0 0.0
    %497 = vmatpush.msra.mxu0 0.0
    %498 = vmatpush.msra.mxu0 0.0
    %499 = vmatpush.msra.mxu0 0.0
    %500 = vmatpush.msra.mxu0 0.0
    %501 = vmatpush.msra.mxu0 0.0
    %502 = vmatpush.msra.mxu0 0.0
    %503 = vmatpush.msra.mxu0 0.0
    %504 = vmatpush.msra.mxu0 0.0
    %505 = vmatpush.msra.mxu0 0.0
    %506 = vmatpush.msra.mxu0 0.0
    %507 = vmatpush.msra.mxu0 0.0
    %508 = vmatpush.msra.mxu0 %v485
    %509 = vmatpush.msra.mxu0 %v484
    %510 = vmatpush.msra.mxu0 %v483
    %511 = vmatpush.msra.mxu0 %v482
    %512 = vmatmul.f32.gmra.mxu0 %v494
    %v513 = vpop.f32.mrf.mxu0
    %v514 = vadd.f32 %v491, %v513
    %515 = vdwg.mxu0
    %v516 = vadd.f32 %v514, 2.0
    %v517 = vxor.u32 %v516, 2147483648
    %v518 = vmul.f32 %v517, 1.442695
    %v519 = vpow.pop %v518
    %v520 = vadd.f32 %v519, 1.0
    %v521 = vrcp.pop %v520
    %v522 = vmul.f32 %v520, %v521
    %v523 = vsub.f32 1.0, %v522
    %v524 = vmul.f32 %v521, %v523
    %v525 = vadd.f32 %v521, %v524
    %vm526 = vweird.f32 %v520
    %vm527 = vweird.f32 %v521
    %vm528 = vmor %vm526, %vm527
    %v529 = vsel %vm528, %v521, %v525
    %v530 = vand.u32 2147483647, %v520
    %vm531 = vcmp.eq.f32.partialorder %v530, 8.507059e+37
    %v532 = vand.u32 %v520, 2147483648
    %v533 = vor.u32 1.1754944e-38, %v532
    %v534 = vsel %vm531, %v533, %v529
    %v535 = vmul.f32 1.0, %v534
    %v536 = vadd.f32 %v535, 1e-06
    %v538 = vrot.slane %v514, 6
    %v540 = vadd.f32 %v339, %v538
    %v541 = vmul.f32 %v540, %v536
    %v542 = vsel %vm292, %v339, %v541
    %v543 = vlog2.pop %v536
    %v544 = vmul.f32 %v543, 0.6931472
    %v545 = vadd.f32 %v296, %v544
    %s546 = scalar_lea.vmem %s6, 160
    %v547 = vld [vmem:[%s546] sm:$0xff]
    %v548 = vld [vmem:[%s546 + $0x8] sm:$0xff]
    %v549 = vld [vmem:[%s546 + $0x10] sm:$0xff]
    %v550 = vld [vmem:[%s546 + $0x18] sm:$0xff]
    %v551 = vld [vmem:[%s546 + $0x20] sm:$0xff]
    %v552 = vld [vmem:[%s546 + $0x28] sm:$0xff]
    %v553 = vld [vmem:[%s546 + $0x30] sm:$0xff]
    %v554 = vld [vmem:[%s546 + $0x38] sm:$0xff]
    %v555 = vld [vmem:[%s546 + $0x40] sm:$0xff]
    %v556 = vld [vmem:[%s546 + $0x48] sm:$0xff]
    %s557 = scalar_lea.vmem %s2, 8
    %v558 = vld [vmem:[%s557] sm:$0xf]
    %560 = vset.pattern.permute.xlu0 0
    %561 = vperm.xlu0 %560, %v547
    %v562 = vpop.permute.xlu0 %561
    %v565 = vsel %vm63, %v558, 0
    %v568 = vsel %vm67, %v542, 0
    %570 = vmatpush.msra.mxu0 0.0
    %571 = vmatpush.msra.mxu0 0.0
    %572 = vmatpush.msra.mxu0 0.0
    %573 = vmatpush.msra.mxu0 0.0
    %574 = vmatpush.msra.mxu0 0.0
    %575 = vmatpush.msra.mxu0 0.0
    %576 = vmatpush.msra.mxu0 0.0
    %577 = vmatpush.msra.mxu0 0.0
    %578 = vmatpush.msra.mxu0 0.0
    %579 = vmatpush.msra.mxu0 0.0
    %580 = vmatpush.msra.mxu0 0.0
    %581 = vmatpush.msra.mxu0 0.0
    %582 = vmatpush.msra.mxu0 0.0
    %583 = vmatpush.msra.mxu0 0.0
    %584 = vmatpush.msra.mxu0 0.0
    %585 = vmatpush.msra.mxu0 %v568
    %586 = vmatmul.f32.gmra.mxu0 %v565
    %v587 = vpop.f32.mrf.mxu0
    %v588 = vadd.f32 %v562, %v587
    %589 = vdwg.mxu0
    %590 = vst [vmem:[#allocation2] sm:$0x3] %v588
    %s591 = scalar_lea.vmem %s3, 64
    %v592 = vld [vmem:[%s591] sm:$0xff]
    %v593 = vld [vmem:[%s591 + $0x8] sm:$0xff]
    %v594 = vld [vmem:[%s591 + $0x10] sm:$0xff]
    %v595 = vld [vmem:[%s591 + $0x18] sm:$0xff]
    %v596 = vld [vmem:[#allocation2] sm:$0x3f]
    %598 = vset.pattern.permute.xlu0 0
    %599 = vperm.xlu0 %598, %v548
    %v600 = vpop.permute.xlu0 %599
    %603 = vset.pattern.permute.xlu0 0
    %604 = vperm.xlu0 %603, %v549
    %v605 = vpop.permute.xlu0 %604
    %608 = vset.pattern.permute.xlu0 0
    %609 = vperm.xlu0 %608, %v550
    %v610 = vpop.permute.xlu0 %609
    %613 = vset.pattern.permute.xlu0 0
    %614 = vperm.xlu0 %613, %v551
    %v615 = vpop.permute.xlu0 %614
    %v618 = vsel %vm117, %v592, 0
    %v621 = vsel %vm117, %v593, 0
    %v624 = vsel %vm117, %v594, 0
    %v627 = vsel %vm117, %v595, 0
    %v630 = vsel %vm130, %v596, 0
    %632 = vmatpush.msra.mxu0 0.0
    %633 = vmatpush.msra.mxu0 0.0
    %634 = vmatpush.msra.mxu0 0.0
    %635 = vmatpush.msra.mxu0 0.0
    %636 = vmatpush.msra.mxu0 0.0
    %637 = vmatpush.msra.mxu0 0.0
    %638 = vmatpush.msra.mxu0 0.0
    %639 = vmatpush.msra.mxu0 0.0
    %640 = vmatpush.msra.mxu0 0.0
    %641 = vmatpush.msra.mxu0 0.0
    %642 = vmatpush.msra.mxu0 0.0
    %643 = vmatpush.msra.mxu0 0.0
    %644 = vmatpush.msra.mxu0 0.0
    %645 = vmatpush.msra.mxu0 0.0
    %646 = vmatpush.msra.mxu0 0.0
    %647 = vmatpush.msra.mxu0 %v630
    %648 = vmatmul.f32.gmra.mxu0 %v618
    %v649 = vpop.f32.mrf.mxu0
    %v650 = vadd.f32 %v600, %v649
    %651 = vmatmul.f32.gmra.mxu0 %v621
    %v652 = vpop.f32.mrf.mxu0
    %v653 = vadd.f32 %v605, %v652
    %654 = vmatmul.f32.gmra.mxu0 %v624
    %v655 = vpop.f32.mrf.mxu0
    %v656 = vadd.f32 %v610, %v655
    %657 = vmatmul.f32.gmra.mxu0 %v627
    %v658 = vpop.f32.mrf.mxu0
    %v659 = vadd.f32 %v615, %v658
    %660 = vdwg.mxu0
    %v661 = vmax.f32 %v650, 0.0
    %v662 = vmax.f32 %v653, 0.0
    %v663 = vmax.f32 %v656, 0.0
    %v664 = vmax.f32 %v659, 0.0
    %s665 = scalar_lea.vmem %s4, 64
    %v666 = vld [vmem:[%s665] sm:$0xff]
    %v667 = vld [vmem:[%s665 + $0x8] sm:$0xff]
    %v668 = vld [vmem:[%s665 + $0x10] sm:$0xff]
    %v669 = vld [vmem:[%s665 + $0x18] sm:$0xff]
    %671 = vset.pattern.permute.xlu0 0
    %672 = vperm.xlu0 %671, %v552
    %v673 = vpop.permute.xlu0 %672
    %676 = vset.pattern.permute.xlu0 0
    %677 = vperm.xlu0 %676, %v553
    %v678 = vpop.permute.xlu0 %677
    %681 = vset.pattern.permute.xlu0 0
    %682 = vperm.xlu0 %681, %v554
    %v683 = vpop.permute.xlu0 %682
    %686 = vset.pattern.permute.xlu0 0
    %687 = vperm.xlu0 %686, %v555
    %v688 = vpop.permute.xlu0 %687
    %v691 = vsel %vm191, %v666, 0
    %v694 = vsel %vm191, %v667, 0
    %v697 = vsel %vm191, %v668, 0
    %v700 = vsel %vm191, %v669, 0
    %702 = vmatpush.msra.mxu0 0.0
    %703 = vmatpush.msra.mxu0 0.0
    %704 = vmatpush.msra.mxu0 0.0
    %705 = vmatpush.msra.mxu0 0.0
    %706 = vmatpush.msra.mxu0 0.0
    %707 = vmatpush.msra.mxu0 0.0
    %708 = vmatpush.msra.mxu0 0.0
    %709 = vmatpush.msra.mxu0 0.0
    %710 = vmatpush.msra.mxu0 0.0
    %711 = vmatpush.msra.mxu0 0.0
    %712 = vmatpush.msra.mxu0 0.0
    %713 = vmatpush.msra.mxu0 0.0
    %714 = vmatpush.msra.mxu0 %v664
    %715 = vmatpush.msra.mxu0 %v663
    %716 = vmatpush.msra.mxu0 %v662
    %717 = vmatpush.msra.mxu0 %v661
    %718 = vmatmul.f32.gmra.mxu0 %v691
    %v719 = vpop.f32.mrf.mxu0
    %v720 = vadd.f32 %v673, %v719
    %721 = vmatmul.f32.gmra.mxu0 %v694
    %v722 = vpop.f32.mrf.mxu0
    %v723 = vadd.f32 %v678, %v722
    %724 = vmatmul.f32.gmra.mxu0 %v697
    %v725 = vpop.f32.mrf.mxu0
    %v726 = vadd.f32 %v683, %v725
    %727 = vmatmul.f32.gmra.mxu0 %v700
    %v728 = vpop.f32.mrf.mxu0
    %v729 = vadd.f32 %v688, %v728
    %730 = vdwg.mxu0
    %v731 = vmax.f32 %v720, 0.0
    %v732 = vmax.f32 %v723, 0.0
    %v733 = vmax.f32 %v726, 0.0
    %v734 = vmax.f32 %v729, 0.0
    %s735 = scalar_lea.vmem %s5, 8
    %v736 = vld [vmem:[%s735] sm:$0xf]
    %738 = vset.pattern.permute.xlu0 0
    %739 = vperm.xlu0 %738, %v556
    %v740 = vpop.permute.xlu0 %739
    %v743 = vsel %vm191, %v736, 0
    %745 = vmatpush.msra.mxu0 0.0
    %746 = vmatpush.msra.mxu0 0.0
    %747 = vmatpush.msra.mxu0 0.0
    %748 = vmatpush.msra.mxu0 0.0
    %749 = vmatpush.msra.mxu0 0.0
    %750 = vmatpush.msra.mxu0 0.0
    %751 = vmatpush.msra.mxu0 0.0
    %752 = vmatpush.msra.mxu0 0.0
    %753 = vmatpush.msra.mxu0 0.0
    %754 = vmatpush.msra.mxu0 0.0
    %755 = vmatpush.msra.mxu0 0.0
    %756 = vmatpush.msra.mxu0 0.0
    %757 = vmatpush.msra.mxu0 %v734
    %758 = vmatpush.msra.mxu0 %v733
    %759 = vmatpush.msra.mxu0 %v732
    %760 = vmatpush.msra.mxu0 %v731
    %761 = vmatmul.f32.gmra.mxu0 %v743
    %v762 = vpop.f32.mrf.mxu0
    %v763 = vadd.f32 %v740, %v762
    %764 = vdwg.mxu0
    %v765 = vadd.f32 %v763, 2.0
    %v766 = vxor.u32 %v765, 2147483648
    %v767 = vmul.f32 %v766, 1.442695
    %v768 = vpow.pop %v767
    %v769 = vadd.f32 %v768, 1.0
    %v770 = vrcp.pop %v769
    %v771 = vmul.f32 %v769, %v770
    %v772 = vsub.f32 1.0, %v771
    %v773 = vmul.f32 %v770, %v772
    %v774 = vadd.f32 %v770, %v773
    %vm775 = vweird.f32 %v769
    %vm776 = vweird.f32 %v770
    %vm777 = vmor %vm775, %vm776
    %v778 = vsel %vm777, %v770, %v774
    %v779 = vand.u32 2147483647, %v769
    %vm780 = vcmp.eq.f32.partialorder %v779, 8.507059e+37
    %v781 = vand.u32 %v769, 2147483648
    %v782 = vor.u32 1.1754944e-38, %v781
    %v783 = vsel %vm780, %v782, %v778
    %v784 = vmul.f32 1.0, %v783
    %v785 = vadd.f32 %v784, 1e-06
    %v787 = vrot.slane %v763, 6
    %v789 = vadd.f32 %v588, %v787
    %v790 = vmul.f32 %v789, %v785
    %v791 = vsel %vm292, %v588, %v790
    %v792 = vlog2.pop %v785
    %v793 = vmul.f32 %v792, 0.6931472
    %v794 = vadd.f32 %v545, %v793
    %795 = vst [vmem:[#allocation6] sm:$0xf] %v791
    %796 = vst [vmem:[#allocation7 - $0x2] sm:$0xc] %v794
    // Predicated region
    $region34: #{tpu_custom_call.1} parent=1 // pred_check
      _
    $region35: #{tpu_custom_call.1} parent=1 // pred_check_branch
      %798 = sbr.rel (0) target = $region37
    $region36: #{tpu_custom_call.1} parent=1 // pred_region
      %800 = vsyncadd [#allocation5], 0
      %s802 = sshll.u32 [#allocation6], 4
      %s803 = int_to_ptr.vmem [resolvable:$true] %s802
      %s804 = sshll.u32 %s7, 4
      %s805 = int_to_ptr.hbm [resolvable:$true] %s804
      %807 = dma.vmem_to_hbm [thread:$0]  %s803, 64, %s805, [#allocation5]
    $region37: #{tpu_custom_call.1} parent=1 // pred_fallthru
      _
    // Predicated region
    $region38: #{tpu_custom_call.1} parent=1 // pred_check
      _
    $region39: #{tpu_custom_call.1} parent=1 // pred_check_branch
      %809 = sbr.rel (0) target = $region41
    $region40: #{tpu_custom_call.1} parent=1 // pred_region
      %811 = vsyncadd [#allocation8], 0
      %s813 = sshll.u32 [#allocation7], 4
      %s814 = int_to_ptr.vmem [resolvable:$true] %s813
      %s815 = sshll.u32 %s8, 4
      %s816 = int_to_ptr.hbm [resolvable:$true] %s815
      %818 = dma.vmem_to_hbm [thread:$0]  %s814, 32, %s816, [#allocation8]
    $region41: #{tpu_custom_call.1} parent=1 // pred_fallthru
      _
    // Predicated region
    $region42: #{tpu_custom_call.1} parent=1 // pred_check
      _
    $region43: #{tpu_custom_call.1} parent=1 // pred_check_branch
      %820 = sbr.rel (0) target = $region45
    $region44: #{tpu_custom_call.1} parent=1 // pred_region
      %822 = dma.done [#allocation5], 64
    $region45: #{tpu_custom_call.1} parent=1 // pred_fallthru
      _
    // Predicated region
    $region46: #{tpu_custom_call.1} parent=1 // pred_check
      _
    $region47: #{tpu_custom_call.1} parent=1 // pred_check_branch
      %824 = sbr.rel (0) target = $region49
    $region48: #{tpu_custom_call.1} parent=1 // pred_region
      %826 = dma.done [#allocation8], 32
    $region49: #{tpu_custom_call.1} parent=1 // pred_fallthru
      _
    %827 = vsyncpa [#allocation4], 1
    %828 = vsyncpa [#allocation5], 1
    %829 = vsyncpa [#allocation8], 1

</llo_original>
